<compile_context>
chip_gen: v7x
topology: tpu7x:2x2x1
jax: 0.10.0
libtpu: 0.0.40
codegen_flags: <defaults>
</compile_context>

<pallas_src>
import functools

import jax
import jax.numpy as jnp
import numpy as np
from jax import lax
from jax.experimental import pallas as pl
from jax.experimental.pallas import tpu as pltpu

NUM_HEADS = 6      # rot, vel, snk, spt, atk, jmp
OUT_COLS = 8       # slab lanes used: [rot(2) | vel(2) | snk | spt | atk | jmp]
SLAB_LANES = 128   # lane-dense output slab width


def _round_up(x, m):
    return (x + m - 1) // m * m


# ----------------------------------------------------------------------------
# Packed-parameter buffer (single f32 buffer; 256 lanes; 8-row aligned sections)
# ----------------------------------------------------------------------------
def param_layout(F, H, S0, S1):
    KH = NUM_HEADS * H
    lanes = _round_up(max(KH, SLAB_LANES), 128)          # 256 when 6H = 192
    lay = {"F": F, "H": H, "S0": S0, "S1": S1, "KH": KH, "LANES": lanes}
    r = 0
    for name, rows in (("R_W1", F),          # fn1 packed weight          (F, 6H)
                       ("R_W2", KH),         # fn2 block-diagonal weight  (6H, 128)
                       ("R_B1", 1),          # fn1 packed bias            (1, 6H)
                       ("R_B2", 1),          # fn2 bias, rot lanes zeroed (1, 128)
                       ("R_B2R", 1),         # fn2 rotation bias only     (1, 128)
                       ("R_GW", 2),          # grid_fn weight, head-0 lanes (2, 6H)
                       ("R_GB", 1),          # grid_fn bias,   head-0 lanes (1, 6H)
                       ("R_AW", NUM_HEADS),  # stat_atn weights           (6, H)
                       ("R_AB", NUM_HEADS),  # s_b * stat_atn bias        (6, H)
                       ("R_RS", S0)):        # 0.1*(i+1) row-scale table  (S0, S1)
        lay[name] = r
        r += _round_up(rows, 8)              # 8-row aligned section starts
    lay["R_TOTAL"] = r
    return lay


def pack_params(params, F, H, S0, S1, lay):
    """Host-side, one-time packing of every parameter into one aligned f32 buffer."""
    KH = lay["KH"]
    P = np.zeros((lay["R_TOTAL"], lay["LANES"]), np.float32)

    # fn1: (6, F, H) -> (F, 6H), head-major columns
    w1 = np.asarray(params["fn1_w"], np.float32)
    P[lay["R_W1"]:lay["R_W1"] + F, :KH] = np.transpose(w1, (1, 0, 2)).reshape(F, KH)
    P[lay["R_B1"], :KH] = np.asarray(params["fn1_b"], np.float32).reshape(-1)

    # fn2: block-diagonal into slab lanes [0:2 rot | 2:4 vel | 4 snk | 5 spt | 6 atk | 7 jmp]
    head_cols = ((0, 2), (2, 2), (4, 1), (5, 1), (6, 1), (7, 1))
    w2 = np.asarray(params["fn2_w"], np.float32)        # (6, H, 2)
    b2 = np.asarray(params["fn2_b"], np.float32)        # (6, 2)
    for k, (c0, w) in enumerate(head_cols):
        P[lay["R_W2"] + k * H:lay["R_W2"] + (k + 1) * H, c0:c0 + w] = w2[k][:, :w]
        if k == 0:
            P[lay["R_B2R"], c0:c0 + w] = b2[k, :w]      # rotation bias kept separate
        else:
            P[lay["R_B2"], c0:c0 + w] = b2[k, :w]

    # grid_fn, zero-padded so its output already lives in head-0 lanes of a (1, 6H) row
    P[lay["R_GW"]:lay["R_GW"] + 2, :H] = np.asarray(params["grid_w"], np.float32)
    P[lay["R_GB"], :H] = np.asarray(params["grid_b"], np.float32).reshape(-1)

    # stat attention: atn = s_w * W + s_b * B ; fold the constant s_b into B here.
    s_b = 0.1 * S1 * (S0 * (S0 + 1) / 2.0)
    P[lay["R_AW"]:lay["R_AW"] + NUM_HEADS, :H] = np.asarray(params["satn_w"], np.float32)
    P[lay["R_AB"]:lay["R_AB"] + NUM_HEADS, :H] = s_b * np.asarray(params["satn_b"], np.float32)

    # 0.1*(i+1) row-scale table (replaces an in-kernel iota)
    rs = 0.1 * (np.arange(S0, dtype=np.float32) + 1.0)
    P[lay["R_RS"]:lay["R_RS"] + S0, :S1] = rs[:, None]

    return jnp.asarray(P)


# ----------------------------------------------------------------------------
# Pallas kernel: whole head stack, 1-D row-parallel grid, resident packed params.
# ----------------------------------------------------------------------------
def _many_to_one_kernel(out_ref, stat_ref, mid9_ref, p_ref, slab_ref, *,
                        H, n_rows, n_mid, lay):
    TM, F = out_ref.shape
    S0, S1 = stat_ref.shape
    KH = NUM_HEADS * H
    is_first = pl.program_id(0) == 0

    stat = stat_ref[...]                                          # (S0, S1) resident

    # ---- stat attention (tiny; recomputed per tile so the row grid stays parallel)
    #      six Linear(1,H) collapse to sum_{i,j} 0.1*(i+1)*(w*stat[i,j] + b) = s_w*w + s_b*b
    #      (s_b is folded into the packed bias host-side).
    row_scale = p_ref[lay["R_RS"]:lay["R_RS"] + S0, 0:S1]         # (S0, S1) constant
    s_w = jnp.sum(stat * row_scale, keepdims=True)                # (1, 1)
    satn_w = p_ref[lay["R_AW"]:lay["R_AW"] + NUM_HEADS, 0:H]      # (6, H)
    atn_b = p_ref[lay["R_AB"]:lay["R_AB"] + NUM_HEADS, 0:H]       # (6, H) = s_b * bias
    atn = s_w * satn_w + atn_b                                    # (6, H)
    a_min = jnp.min(atn, axis=1, keepdims=True)
    a_max = jnp.max(atn, axis=1, keepdims=True)
    span = a_max - a_min
    # zero-span guard (the reference would produce NaN for a constant head; documented deviation)
    inv = pl.reciprocal(jnp.where(span != 0.0, span, 1.0), approx=False)
    atn = (atn - a_min) * inv                                     # (6, H)
    # head-major (1, 6H) gating row: a tiny lane concat instead of slicing the big h tile
    atn_row = jnp.concatenate([atn[k:k + 1, :] for k in range(NUM_HEADS)], axis=1)

    # ---- grid branch: sum_m Linear(2,H)(mid9[m]) == (sum_m mid9) @ W + M*b.
    #      gw/gb are zero outside lanes [0,H) so g is already the head-0 slice of a (1,6H) row.
    sm = jnp.sum(mid9_ref[...], axis=0, keepdims=True)            # (1, 2)
    gw = p_ref[lay["R_GW"]:lay["R_GW"] + 2, 0:KH]
    gb = p_ref[lay["R_GB"]:lay["R_GB"] + 1, 0:KH]
    g = sm[:, 0:1] * gw[0:1, :] + sm[:, 1:2] * gw[1:2, :] + float(n_mid) * gb   # (1, 6H)

    # ---- matmul 1: all six fn1 heads at once, (TM, F) @ (F, 6H)
    w1 = p_ref[lay["R_W1"]:lay["R_W1"] + F, 0:KH]                 # (F, 6H)
    b1 = p_ref[lay["R_B1"]:lay["R_B1"] + 1, 0:KH]                 # (1, 6H)
    h = jnp.dot(out_ref[...], w1, preferred_element_type=jnp.float32) + b1      # (TM, 6H)

    # gate with one broadcast multiply; fold the UNGATED grid row into row 0 of tile 0
    # (block-diagonal w2 means it only feeds the rotation lanes) -> no (N+1)-row concat.
    zrow = lax.broadcasted_iota(jnp.int32, (TM, KH), 0)
    z = atn_row * h + jnp.where(jnp.logical_and(zrow == 0, is_first), g, 0.0)   # (TM, 6H)

    # ---- matmul 2: all six fn2 heads against the block-diagonal (6H, 128) weight
    w2 = p_ref[lay["R_W2"]:lay["R_W2"] + KH, 0:SLAB_LANES]
    y = jnp.dot(z, w2, preferred_element_type=jnp.float32)        # (TM, 128)

    # ---- lane-masked epilogue on the full (TM, 128) tile; single unmasked store
    #      lanes: 0:2 rot per-row partial | 2:4 vel | 4 snk | 5 spt | 6 atk | 7 jmp
    lane = lax.broadcasted_iota(jnp.int32, (TM, SLAB_LANES), 1)
    row = lax.broadcasted_iota(jnp.int32, (TM, SLAB_LANES), 0)
    b2 = p_ref[lay["R_B2"]:lay["R_B2"] + 1, 0:SLAB_LANES]         # rot lanes zeroed at pack time
    b2rot = p_ref[lay["R_B2R"]:lay["R_B2R"] + 1, 0:SLAB_LANES]    # only lanes 0:2 nonzero
    yb = y + b2
    vel = (0.2 * 8.0) * jnp.tanh(yb)                              # full-width EUP pass
    gates = jax.nn.sigmoid(yb)
    stat91 = stat[9:10, 1:2]
    gates = gates * jnp.where(lane == 7, stat91, 1.0)             # jumping *= stat[9,1]
    # per-row rotation partials; (N+1)*b_rot lands on row 0 of tile 0 only, so the
    # consumer's sum(slab[:N, 0:2]) is exactly the tanh argument of the reference.
    rot = y + jnp.where(jnp.logical_and(row == 0, is_first),
                        float(n_rows + 1) * b2rot, 0.0)
    res = jnp.where(lane < 2, rot, jnp.where(lane < 4, vel, gates))
    slab_ref[...] = jnp.where(lane < OUT_COLS, res, 0.0)


def many_to_one_forward(out_flat, stat, mid9, packed_params, *,
                        hidden_size, layout, row_tile=None):
    """Fused head stack.  Returns a lane-dense (rows_padded, 128) f32 slab; use
    split_outputs(slab, N) at the consumer to obtain the six module outputs."""
    N, F = out_flat.shape
    assert F == layout["F"] and hidden_size == layout["H"]
    # The packed row-scale table / s_b / stat[9][1] assume these shapes; VMEM refs are
    # not bounds-checked at runtime, so keep this in sync with param_layout.
    assert stat.shape == (layout["S0"], layout["S1"])
    assert stat.shape[0] >= 10 and stat.shape[1] >= 2, "stat must be at least (10, 2)"
    assert packed_params.shape == (layout["R_TOTAL"], layout["LANES"])

    if row_tile is None:
        row_tile = min(512, _round_up(N, 8))   # largest tile; ~0.35us/step amortized
    row_tile = max(8, _round_up(row_tile, 8))
    n_pad = _round_up(N, row_tile)
    if n_pad != N:
        out_flat = jnp.pad(out_flat, ((0, n_pad - N), (0, 0)))
    num_tiles = n_pad // row_tile

    kernel = functools.partial(_many_to_one_kernel, H=hidden_size, n_rows=N,
                               n_mid=mid9.shape[0], lay=layout)
    slab = pl.pallas_call(
        kernel,
        out_shape=jax.ShapeDtypeStruct((n_pad, SLAB_LANES), jnp.float32),
        grid=(num_tiles,),
        in_specs=[
            pl.BlockSpec((row_tile, F), lambda i: (i, 0)),        # rows are gridded
            pl.BlockSpec(stat.shape, lambda i: (0, 0)),           # resident
            pl.BlockSpec(mid9.shape, lambda i: (0, 0)),           # resident
            pl.BlockSpec(packed_params.shape, lambda i: (0, 0)),  # resident
        ],
        out_specs=pl.BlockSpec((row_tile, SLAB_LANES), lambda i: (i, 0)),
        compiler_params=pltpu.CompilerParams(
            dimension_semantics=("parallel",)),                   # v7x dual-TC row split
    )(out_flat, stat, mid9, packed_params)
    return slab


def split_outputs(slab, n_rows):
    """Consumer-side split of the slab (review: one slab out, split lazily at the user).
    The rotation head reduces over ALL rows (grid-row term + (N+1)*bias already folded
    into slab row 0 by the kernel); finalizing it here keeps the kernel row-parallel."""
    rotation = 60.0 * jnp.tanh(jnp.sum(slab[:n_rows, 0:2], axis=0))
    velocity = slab[:n_rows, 2:4]
    isSneaking = slab[:n_rows, 4]
    isSprinting = slab[:n_rows, 5]
    attackIndex = slab[:n_rows, 6]
    isJumping = slab[:n_rows, 7]
    return rotation, velocity, isSneaking, isSprinting, attackIndex, isJumping


# TODO(synk): `encoder` is an external, unspecified submodule; replaced here by a
# deterministic synthetic linear encoder (plain-JAX glue, not the hot path).
def synthetic_encoder(stat, vel, opp_grid, opp_mid, enc_w, enc_b, n_rows, feat):
    x = jnp.concatenate([stat.ravel(), vel.ravel(), opp_grid.ravel(), opp_mid.ravel()])
    y = jnp.tanh(x @ enc_w + enc_b)
    return y.reshape(n_rows, feat)


# ---- pure-JAX reference (mirrors the PyTorch module semantics) --------------
def reference(out_flat, stat, mid9, params):
    S0, S1 = stat.shape
    row_w = 0.1 * (jnp.arange(S0, dtype=jnp.float32) + 1.0)[:, None, None]
    atns = []
    for k in range(NUM_HEADS):
        a = stat[:, :, None] * params["satn_w"][k] + params["satn_b"][k]   # (S0,S1,H)
        a = (a * row_w).sum(axis=(0, 1))                                   # (H,)
        a = (a - a.min()) / (a.max() - a.min())
        atns.append(a)
    g = (mid9 @ params["grid_w"] + params["grid_b"][None, :]).sum(0, keepdims=True)
    z = [atns[k][None, :] * (out_flat @ params["fn1_w"][k] + params["fn1_b"][k][None, :])
         for k in range(NUM_HEADS)]
    rot_in = jnp.concatenate([g, z[0]], axis=0)
    rotation = 60.0 * jnp.tanh(
        (rot_in @ params["fn2_w"][0] + params["fn2_b"][0][None, :]).sum(0))
    velocity = 0.2 * 8.0 * jnp.tanh(z[1] @ params["fn2_w"][1] + params["fn2_b"][1][None, :])

    def small_head(k):
        return jax.nn.sigmoid(z[k] @ params["fn2_w"][k][:, 0] + params["fn2_b"][k][0])

    return (rotation, velocity, small_head(2), small_head(3), small_head(4),
            stat[9, 1] * small_head(5))


if __name__ == "__main__":
    OUT_DIM, SEQ_LEN, HIDDEN = 4, 8, 32
    F = OUT_DIM * SEQ_LEN          # Linear fan-in = output * seq_len = 32
    N = 2                          # encoder output rows (module-sized case)
    S0, S1 = 10, 4                 # stat (module indexes stat[9][1])
    M = 6                          # entities per opponentMid timestep

    key = jax.random.PRNGKey(0)
    ks = jax.random.split(key, 9)

    stat = jax.random.normal(ks[0], (S0, S1), jnp.float32)
    vel_in = jax.random.normal(ks[1], (S0, 2), jnp.float32)
    opp_grid = jax.random.normal(ks[2], (S0, 8, 8), jnp.float32)
    opp_mid = jax.random.normal(ks[3], (S0, M, 2), jnp.float32)

    total_in = stat.size + vel_in.size + opp_grid.size + opp_mid.size
    enc_w = 0.05 * jax.random.normal(ks[4], (total_in, N * F), jnp.float32)
    enc_b = 0.05 * jax.random.normal(ks[5], (N * F,), jnp.float32)
    out_flat = synthetic_encoder(stat, vel_in, opp_grid, opp_mid, enc_w, enc_b, N, F)

    def linear_init(k, fan_in, shape):
        bound = 1.0 / np.sqrt(fan_in)
        return jax.random.uniform(k, shape, jnp.float32, -bound, bound)

    pk = jax.random.split(ks[6], 8)
    params = {
        "grid_w": linear_init(pk[0], 2, (2, HIDDEN)),
        "grid_b": linear_init(pk[1], 2, (HIDDEN,)),
        "satn_w": linear_init(pk[2], 1, (NUM_HEADS, HIDDEN)),
        "satn_b": linear_init(pk[3], 1, (NUM_HEADS, HIDDEN)),
        "fn1_w": linear_init(pk[4], F, (NUM_HEADS, F, HIDDEN)),
        "fn1_b": linear_init(pk[5], F, (NUM_HEADS, HIDDEN)),
        "fn2_w": linear_init(pk[6], HIDDEN, (NUM_HEADS, HIDDEN, 2)),  # heads 2..5 use col 0 only
        "fn2_b": linear_init(pk[7], HIDDEN, (NUM_HEADS, 2)),
    }

    mid9 = opp_mid[9]

    lay = param_layout(F, HIDDEN, S0, S1)
    packed = pack_params(params, F, HIDDEN, S0, S1, lay)     # built once, reused per call

    # --- module-sized case: N=2 -> one padded (8, 128) tile, single grid step ---
    fwd = jax.jit(functools.partial(many_to_one_forward, hidden_size=HIDDEN, layout=lay))
    slab = jax.block_until_ready(fwd(out_flat, stat, mid9, packed))
    got = split_outputs(slab, N)
    want = reference(out_flat, stat, mid9, params)
    for g_, w_ in zip(got, want):
        np.testing.assert_allclose(np.asarray(g_), np.asarray(w_), rtol=5e-2, atol=1e-1)

    # --- batched case: exercises the row-parallel grid (3 tiles of 16 rows) and the
    #     cross-tile rotation reduction finalized at the consumer ---
    N2 = 48
    out_flat2 = jax.random.normal(ks[7], (N2, F), jnp.float32)
    fwd2 = jax.jit(functools.partial(many_to_one_forward, hidden_size=HIDDEN,
                                     layout=lay, row_tile=16))
    slab2 = jax.block_until_ready(fwd2(out_flat2, stat, mid9, packed))
    got2 = split_outputs(slab2, N2)
    want2 = reference(out_flat2, stat, mid9, params)
    for g_, w_ in zip(got2, want2):
        np.testing.assert_allclose(np.asarray(g_), np.asarray(w_), rtol=5e-2, atol=1e-1)

    print("KERNEL_OK")
</pallas_src>

<mosaic_0001>
module attributes {stable_mosaic.version = 11 : i64} {
  func.func @_many_to_one_kernel(%arg0: i32, %arg1: memref<8x32xf32, #tpu.memory_space<vmem>>, %arg2: memref<10x4xf32, #tpu.memory_space<vmem>>, %arg3: memref<6x2xf32, #tpu.memory_space<vmem>>, %arg4: memref<296x256xf32, #tpu.memory_space<vmem>>, %arg5: memref<8x128xf32, #tpu.memory_space<vmem>>) attributes {dimension_semantics = [#tpu.dimension_semantics<parallel>], iteration_bounds = array<i64: 1>, scalar_prefetch = 0 : i64, scratch_operands = 0 : i64, tpu.core_type = #tpu.core_type<tc>, window_params = [{transform_indices = @transform_0, window_bounds = array<i64: 8, 32>}, {pipeline_mode = #tpu.pipeline_mode<synchronous>, transform_indices = @transform_1, window_bounds = array<i64: 10, 4>}, {pipeline_mode = #tpu.pipeline_mode<synchronous>, transform_indices = @transform_2, window_bounds = array<i64: 6, 2>}, {pipeline_mode = #tpu.pipeline_mode<synchronous>, transform_indices = @transform_3, window_bounds = array<i64: 296, 256>}, {transform_indices = @transform_4, window_bounds = array<i64: 8, 128>}]} {
    %c0_i32 = arith.constant 0 : i32
    %0 = arith.cmpi eq, %arg0, %c0_i32 : i32
    %c0 = arith.constant 0 : index
    %c0_0 = arith.constant 0 : index
    %1 = vector.load %arg2[%c0, %c0_0] : memref<10x4xf32, #tpu.memory_space<vmem>>, vector<10x4xf32>
    %c280 = arith.constant 280 : index
    %c0_1 = arith.constant 0 : index
    %2 = vector.load %arg4[%c280, %c0_1] : memref<296x256xf32, #tpu.memory_space<vmem>>, vector<10x4xf32>
    %3 = arith.mulf %1, %2 : vector<10x4xf32>
    %4 = vector.shape_cast %3 : vector<10x4xf32> to vector<1x10x4xf32>
    %cst = arith.constant dense<0.000000e+00> : vector<1xf32>
    %5 = vector.multi_reduction <add>, %4, %cst [1, 2] : vector<1x10x4xf32> to vector<1xf32>
    %6 = vector.shape_cast %5 : vector<1xf32> to vector<1x1x1xf32>
    %7 = vector.extract %6[0, 0, 0] : f32 from vector<1x1x1xf32>
    %8 = vector.broadcast %7 : f32 to vector<1x1xf32>
    %c264 = arith.constant 264 : index
    %c0_2 = arith.constant 0 : index
    %9 = vector.load %arg4[%c264, %c0_2] : memref<296x256xf32, #tpu.memory_space<vmem>>, vector<6x32xf32>
    %c272 = arith.constant 272 : index
    %c0_3 = arith.constant 0 : index
    %10 = vector.load %arg4[%c272, %c0_3] : memref<296x256xf32, #tpu.memory_space<vmem>>, vector<6x32xf32>
    %11 = vector.broadcast %8 : vector<1x1xf32> to vector<6x32xf32>
    %12 = arith.mulf %11, %9 : vector<6x32xf32>
    %13 = arith.addf %12, %10 : vector<6x32xf32>
    %cst_4 = arith.constant dense<0x7F800000> : vector<6xf32>
    %14 = vector.multi_reduction <minimumf>, %13, %cst_4 [1] : vector<6x32xf32> to vector<6xf32>
    %15 = vector.shape_cast %14 : vector<6xf32> to vector<6x1xf32>
    %cst_5 = arith.constant dense<0xFF800000> : vector<6xf32>
    %16 = vector.multi_reduction <maximumf>, %13, %cst_5 [1] : vector<6x32xf32> to vector<6xf32>
    %17 = vector.shape_cast %16 : vector<6xf32> to vector<6x1xf32>
    %18 = arith.subf %17, %15 : vector<6x1xf32>
    %cst_6 = arith.constant 0.000000e+00 : f32
    %19 = vector.broadcast %cst_6 : f32 to vector<6x1xf32>
    %20 = arith.cmpf one, %18, %19 : vector<6x1xf32>
    %cst_7 = arith.constant 1.000000e+00 : f32
    %21 = vector.broadcast %cst_7 : f32 to vector<6x1xf32>
    %22 = arith.select %20, %18, %21 : vector<6x1xi1>, vector<6x1xf32>
    %23 = tpu.reciprocal %22 : vector<6x1xf32> -> vector<6x1xf32>
    %24 = vector.broadcast %15 : vector<6x1xf32> to vector<6x32xf32>
    %25 = arith.subf %13, %24 : vector<6x32xf32>
    %26 = vector.broadcast %23 : vector<6x1xf32> to vector<6x32xf32>
    %27 = arith.mulf %25, %26 : vector<6x32xf32>
    %28 = vector.extract_strided_slice %27 {offsets = [0, 0], sizes = [1, 32], strides = [1, 1]} : vector<6x32xf32> to vector<1x32xf32>
    %29 = vector.extract_strided_slice %27 {offsets = [1, 0], sizes = [1, 32], strides = [1, 1]} : vector<6x32xf32> to vector<1x32xf32>
    %30 = vector.extract_strided_slice %27 {offsets = [2, 0], sizes = [1, 32], strides = [1, 1]} : vector<6x32xf32> to vector<1x32xf32>
    %31 = vector.extract_strided_slice %27 {offsets = [3, 0], sizes = [1, 32], strides = [1, 1]} : vector<6x32xf32> to vector<1x32xf32>
    %32 = vector.extract_strided_slice %27 {offsets = [4, 0], sizes = [1, 32], strides = [1, 1]} : vector<6x32xf32> to vector<1x32xf32>
    %33 = vector.extract_strided_slice %27 {offsets = [5, 0], sizes = [1, 32], strides = [1, 1]} : vector<6x32xf32> to vector<1x32xf32>
    %34 = tpu.concatenate %28, %29, %30, %31, %32, %33 in 1 : vector<1x32xf32>, vector<1x32xf32>, vector<1x32xf32>, vector<1x32xf32>, vector<1x32xf32>, vector<1x32xf32> -> vector<1x192xf32>
    %c0_8 = arith.constant 0 : index
    %c0_9 = arith.constant 0 : index
    %35 = vector.load %arg3[%c0_8, %c0_9] : memref<6x2xf32, #tpu.memory_space<vmem>>, vector<6x2xf32>
    %cst_10 = arith.constant dense<0.000000e+00> : vector<2xf32>
    %36 = vector.multi_reduction <add>, %35, %cst_10 [0] : vector<6x2xf32> to vector<2xf32>
    %37 = vector.shape_cast %36 : vector<2xf32> to vector<1x2xf32>
    %c248 = arith.constant 248 : index
    %c0_11 = arith.constant 0 : index
    %38 = vector.load %arg4[%c248, %c0_11] : memref<296x256xf32, #tpu.memory_space<vmem>>, vector<2x192xf32>
    %c256 = arith.constant 256 : index
    %c0_12 = arith.constant 0 : index
    %39 = vector.load %arg4[%c256, %c0_12] : memref<296x256xf32, #tpu.memory_space<vmem>>, vector<1x192xf32>
    %40 = vector.extract_strided_slice %37 {offsets = [0, 0], sizes = [1, 1], strides = [1, 1]} : vector<1x2xf32> to vector<1x1xf32>
    %41 = vector.extract_strided_slice %38 {offsets = [0, 0], sizes = [1, 192], strides = [1, 1]} : vector<2x192xf32> to vector<1x192xf32>
    %42 = vector.broadcast %40 : vector<1x1xf32> to vector<1x192xf32>
    %43 = arith.mulf %42, %41 : vector<1x192xf32>
    %44 = vector.extract_strided_slice %37 {offsets = [0, 1], sizes = [1, 1], strides = [1, 1]} : vector<1x2xf32> to vector<1x1xf32>
    %45 = vector.extract_strided_slice %38 {offsets = [1, 0], sizes = [1, 192], strides = [1, 1]} : vector<2x192xf32> to vector<1x192xf32>
    %46 = vector.broadcast %44 : vector<1x1xf32> to vector<1x192xf32>
    %47 = arith.mulf %46, %45 : vector<1x192xf32>
    %48 = arith.addf %43, %47 : vector<1x192xf32>
    %cst_13 = arith.constant 6.000000e+00 : f32
    %49 = vector.broadcast %cst_13 : f32 to vector<1x192xf32>
    %50 = arith.mulf %49, %39 : vector<1x192xf32>
    %51 = arith.addf %48, %50 : vector<1x192xf32>
    %c0_14 = arith.constant 0 : index
    %c0_15 = arith.constant 0 : index
    %52 = vector.load %arg4[%c0_14, %c0_15] : memref<296x256xf32, #tpu.memory_space<vmem>>, vector<32x192xf32>
    %c224 = arith.constant 224 : index
    %c0_16 = arith.constant 0 : index
    %53 = vector.load %arg4[%c224, %c0_16] : memref<296x256xf32, #tpu.memory_space<vmem>>, vector<1x192xf32>
    %c0_17 = arith.constant 0 : index
    %c0_18 = arith.constant 0 : index
    %54 = vector.load %arg1[%c0_17, %c0_18] : memref<8x32xf32, #tpu.memory_space<vmem>>, vector<8x32xf32>
    %cst_19 = arith.constant dense<0.000000e+00> : vector<8x192xf32>
    %55 = tpu.matmul %54, %52, %cst_19 {dimension_numbers = #tpu.dot_dimension_numbers<[1], [0], [0], [1], [0, 0, 1, 1], [], []>} : vector<8x32xf32>, vector<32x192xf32>, vector<8x192xf32> -> vector<8x192xf32>
    %56 = vector.broadcast %53 : vector<1x192xf32> to vector<8x192xf32>
    %57 = arith.addf %55, %56 : vector<8x192xf32>
    %58 = tpu.iota {dimensions = array<i32: 0>} : vector<8x192xi32>
    %59 = vector.broadcast %34 : vector<1x192xf32> to vector<8x192xf32>
    %60 = arith.mulf %59, %57 : vector<8x192xf32>
    %c0_i32_20 = arith.constant 0 : i32
    %61 = vector.broadcast %c0_i32_20 : i32 to vector<8x192xi32>
    %62 = arith.cmpi eq, %58, %61 : vector<8x192xi32>
    %63 = vector.broadcast %0 : i1 to vector<8x192xi1>
    %64 = arith.andi %62, %63 : vector<8x192xi1>
    %cst_21 = arith.constant 0.000000e+00 : f32
    %65 = vector.shape_cast %51 : vector<1x192xf32> to vector<1x192xf32>
    %66 = vector.broadcast %65 : vector<1x192xf32> to vector<8x192xf32>
    %67 = vector.broadcast %cst_21 : f32 to vector<8x192xf32>
    %68 = arith.select %64, %66, %67 : vector<8x192xi1>, vector<8x192xf32>
    %69 = arith.addf %60, %68 : vector<8x192xf32>
    %c32 = arith.constant 32 : index
    %c0_22 = arith.constant 0 : index
    %70 = vector.load %arg4[%c32, %c0_22] : memref<296x256xf32, #tpu.memory_space<vmem>>, vector<192x128xf32>
    %cst_23 = arith.constant dense<0.000000e+00> : vector<8x128xf32>
    %71 = tpu.matmul %69, %70, %cst_23 {dimension_numbers = #tpu.dot_dimension_numbers<[1], [0], [0], [1], [0, 0, 1, 1], [], []>} : vector<8x192xf32>, vector<192x128xf32>, vector<8x128xf32> -> vector<8x128xf32>
    %72 = tpu.iota {dimensions = array<i32: 1>} : vector<8x128xi32>
    %73 = tpu.iota {dimensions = array<i32: 0>} : vector<8x128xi32>
    %c232 = arith.constant 232 : index
    %c0_24 = arith.constant 0 : index
    %74 = vector.load %arg4[%c232, %c0_24] : memref<296x256xf32, #tpu.memory_space<vmem>>, vector<1x128xf32>
    %c240 = arith.constant 240 : index
    %c0_25 = arith.constant 0 : index
    %75 = vector.load %arg4[%c240, %c0_25] : memref<296x256xf32, #tpu.memory_space<vmem>>, vector<1x128xf32>
    %76 = vector.broadcast %74 : vector<1x128xf32> to vector<8x128xf32>
    %77 = arith.addf %71, %76 : vector<8x128xf32>
    %78 = math.tanh %77 : vector<8x128xf32>
    %cst_26 = arith.constant 1.600000e+00 : f32
    %79 = vector.broadcast %cst_26 : f32 to vector<8x128xf32>
    %80 = arith.mulf %79, %78 : vector<8x128xf32>
    %81 = arith.negf %77 : vector<8x128xf32>
    %82 = math.exp %81 : vector<8x128xf32>
    %cst_27 = arith.constant 1.000000e+00 : f32
    %83 = vector.broadcast %cst_27 : f32 to vector<8x128xf32>
    %84 = arith.addf %83, %82 : vector<8x128xf32>
    %85 = arith.divf %83, %84 : vector<8x128xf32>
    %86 = vector.extract_strided_slice %1 {offsets = [9, 1], sizes = [1, 1], strides = [1, 1]} : vector<10x4xf32> to vector<1x1xf32>
    %c7_i32 = arith.constant 7 : i32
    %87 = vector.broadcast %c7_i32 : i32 to vector<8x128xi32>
    %88 = arith.cmpi eq, %72, %87 : vector<8x128xi32>
    %cst_28 = arith.constant 1.000000e+00 : f32
    %89 = vector.shape_cast %86 : vector<1x1xf32> to vector<1x1xf32>
    %90 = vector.broadcast %89 : vector<1x1xf32> to vector<8x128xf32>
    %91 = vector.broadcast %cst_28 : f32 to vector<8x128xf32>
    %92 = arith.select %88, %90, %91 : vector<8x128xi1>, vector<8x128xf32>
    %93 = arith.mulf %85, %92 : vector<8x128xf32>
    %c0_i32_29 = arith.constant 0 : i32
    %94 = vector.broadcast %c0_i32_29 : i32 to vector<8x128xi32>
    %95 = arith.cmpi eq, %73, %94 : vector<8x128xi32>
    %96 = vector.broadcast %0 : i1 to vector<8x128xi1>
    %97 = arith.andi %95, %96 : vector<8x128xi1>
    %cst_30 = arith.constant 3.000000e+00 : f32
    %98 = vector.broadcast %cst_30 : f32 to vector<1x128xf32>
    %99 = arith.mulf %98, %75 : vector<1x128xf32>
    %cst_31 = arith.constant 0.000000e+00 : f32
    %100 = vector.shape_cast %99 : vector<1x128xf32> to vector<1x128xf32>
    %101 = vector.broadcast %100 : vector<1x128xf32> to vector<8x128xf32>
    %102 = vector.broadcast %cst_31 : f32 to vector<8x128xf32>
    %103 = arith.select %97, %101, %102 : vector<8x128xi1>, vector<8x128xf32>
    %104 = arith.addf %71, %103 : vector<8x128xf32>
    %c2_i32 = arith.constant 2 : i32
    %105 = vector.broadcast %c2_i32 : i32 to vector<8x128xi32>
    %106 = arith.cmpi slt, %72, %105 : vector<8x128xi32>
    %c4_i32 = arith.constant 4 : i32
    %107 = vector.broadcast %c4_i32 : i32 to vector<8x128xi32>
    %108 = arith.cmpi slt, %72, %107 : vector<8x128xi32>
    %109 = arith.select %108, %80, %93 : vector<8x128xi1>, vector<8x128xf32>
    %110 = arith.select %106, %104, %109 : vector<8x128xi1>, vector<8x128xf32>
    %c8_i32 = arith.constant 8 : i32
    %111 = vector.broadcast %c8_i32 : i32 to vector<8x128xi32>
    %112 = arith.cmpi slt, %72, %111 : vector<8x128xi32>
    %cst_32 = arith.constant 0.000000e+00 : f32
    %113 = vector.broadcast %cst_32 : f32 to vector<8x128xf32>
    %114 = arith.select %112, %110, %113 : vector<8x128xi1>, vector<8x128xf32>
    %c0_33 = arith.constant 0 : index
    %c0_34 = arith.constant 0 : index
    %115 = vector.load %arg5[%c0_33, %c0_34] : memref<8x128xf32, #tpu.memory_space<vmem>>, vector<8x128xf32>
    tpu.vector_store %arg5[%c0_33, %c0_34], %114 {strides = array<i32>} : memref<8x128xf32, #tpu.memory_space<vmem>>, vector<8x128xf32>,
    return
  }
  func.func @transform_0(%arg0: i32) -> (i32, i32) {
    %c0_i32 = arith.constant 0 : i32
    %c0_i32_0 = arith.constant 0 : i32
    return %arg0, %c0_i32 : i32, i32
  }
  func.func @transform_1(%arg0: i32) -> (i32, i32) {
    %c0_i32 = arith.constant 0 : i32
    %c0_i32_0 = arith.constant 0 : i32
    %c0_i32_1 = arith.constant 0 : i32
    return %c0_i32, %c0_i32_0 : i32, i32
  }
  func.func @transform_2(%arg0: i32) -> (i32, i32) {
    %c0_i32 = arith.constant 0 : i32
    %c0_i32_0 = arith.constant 0 : i32
    %c0_i32_1 = arith.constant 0 : i32
    return %c0_i32, %c0_i32_0 : i32, i32
  }
  func.func @transform_3(%arg0: i32) -> (i32, i32) {
    %c0_i32 = arith.constant 0 : i32
    %c0_i32_0 = arith.constant 0 : i32
    %c0_i32_1 = arith.constant 0 : i32
    return %c0_i32, %c0_i32_0 : i32, i32
  }
  func.func @transform_4(%arg0: i32) -> (i32, i32) {
    %c0_i32 = arith.constant 0 : i32
    %c0_i32_0 = arith.constant 0 : i32
    return %arg0, %c0_i32 : i32, i32
  }
}

</mosaic_0001>

<llo_original>
// kernel: many_to_one_forward.1
$region0: #{many_to_one_forward.1}
  #allocation0 [shape = 'u32[]', space=smem, size = 0x4, offset = 0x4, fixed_abs, tag = 'smem constant byte address 0x4 - core index']
  #allocation1 [shape = 'u32[144,128]{1,0:T(1,128)}', space=vmem, size = 0x12000, scoped, tag = 'internal scratch']
  %s0 = inlined_call_operand.vmem [shape: f32[8,32], index: 0, kind: input, shape index: {}]
  %s1 = inlined_call_operand.vmem [shape: f32[10,4], index: 1, kind: input, shape index: {}]
  %s2 = inlined_call_operand.vmem [shape: f32[6,2], index: 2, kind: input, shape index: {}]
  %s3 = inlined_call_operand.hbm [shape: f32[296,256], index: 3, kind: input, shape index: {}]
  %s4 = inlined_call_operand.hbm [shape: f32[8,128], index: 4, kind: output, shape index: {}]
  %s5 = sld [smem:[#allocation0]]
  $region30: #{many_to_one_forward.1} parent=0
    _
  %s7 = ssub.s32 1, %s5
  %s8 = scalar_select 0, %s7, %s5
  $region1: #{many_to_one_forward.1} parent=0
    #allocation2 [shape = 'u8[303104]{0}', space=vmem, size = 0x4a000, scoped, tag = 'input window, operand 3, single buffered']
    #allocation3 [shape = 's32[1]{0}', space=sflag, size = 0x4, scoped, tag = 'scoped memory for many_to_one_forward.1']
    #allocation4 [shape = 's32[1]{0}', space=sflag, size = 0x4, scoped, tag = 'scoped memory for many_to_one_forward.1']
    #allocation5 [shape = 'u8[4096]{0}', space=vmem, size = 0x1000, scoped, tag = 'output window, operand 0, single buffered']
    %9 = vsyncpa [#allocation3], 0
    %10 = vsyncpa [#allocation4], 0
    // Predicated region
    $region2: #{many_to_one_forward.1} parent=1 // pred_check
      _
    $region3: #{many_to_one_forward.1} parent=1 // pred_check_branch
      %12 = sbr.rel (0) target = $region5
    $region4: #{many_to_one_forward.1} parent=1 // pred_region
      _
    $region5: #{many_to_one_forward.1} parent=1 // pred_fallthru
      _
    // Predicated region
    $region6: #{many_to_one_forward.1} parent=1 // pred_check
      _
    $region7: #{many_to_one_forward.1} parent=1 // pred_check_branch
      %14 = sbr.rel (0) target = $region9
    $region8: #{many_to_one_forward.1} parent=1 // pred_region
      _
    $region9: #{many_to_one_forward.1} parent=1 // pred_fallthru
      _
    // Predicated region
    $region10: #{many_to_one_forward.1} parent=1 // pred_check
      _
    $region11: #{many_to_one_forward.1} parent=1 // pred_check_branch
      %16 = sbr.rel (0) target = $region13
    $region12: #{many_to_one_forward.1} parent=1 // pred_region
      _
    $region13: #{many_to_one_forward.1} parent=1 // pred_fallthru
      _
    // Predicated region
    $region14: #{many_to_one_forward.1} parent=1 // pred_check
      _
    $region15: #{many_to_one_forward.1} parent=1 // pred_check_branch
      %18 = sbr.rel (0) target = $region17
    $region16: #{many_to_one_forward.1} parent=1 // pred_region
      %s20 = ssub.s32 9472, 9472
      %21 = vsyncadd [#allocation3], %s20
      %s22 = sshll.u32 [#allocation2], 4
      %s23 = int_to_ptr.vmem [resolvable:$true] %s22
      %28 = dma.hbm_to_vmem [thread:$0]  %s3, 9472, %s23, [#allocation3], 256, 256, 16
    $region17: #{many_to_one_forward.1} parent=1 // pred_fallthru
      _
    // Predicated region
    $region18: #{many_to_one_forward.1} parent=1 // pred_check
      _
    $region19: #{many_to_one_forward.1} parent=1 // pred_check_branch
      %30 = sbr.rel (0) target = $region21
    $region20: #{many_to_one_forward.1} parent=1 // pred_region
      %31 = dma.done [#allocation3], 9472
    $region21: #{many_to_one_forward.1} parent=1 // pred_fallthru
      _
    %p32 = scmp.eq.s32.totalorder 0, 0
    %v33 = vld [vmem:[%s1] sm:$0xff]
    %v34 = vld [vmem:[%s1 + $0x8] sm:$0x3]
    %v35 = vld [vmem:[#allocation2 + $0x230] sm:$0xff]
    %v36 = vld [vmem:[#allocation2 + $0x240] sm:$0x3]
    %v37 = vmul.f32 %v33, %v35
    %v38 = vmul.f32 %v34, %v36
    %vm39 = vcmask 31744
    %v40 = vsel %vm39, %v37, 0.0
    %vm41 = vcmask 25600
    %v42 = vsel %vm41, %v38, 0.0
    %v43 = vadd.f32 %v40, %v42
    %44 = vadd.xlane.f32.xlu0 %v43
    %v45 = vpop.xlane.xlu0 %44
    %v46 = vrot.slane %v45, 4
    %v47 = vadd.f32 %v45, %v46
    %v48 = vrot.slane %v47, 2
    %v49 = vadd.f32 %v47, %v48
    %v50 = vrot.slane %v49, 1
    %v51 = vadd.f32 %v49, %v50
    %s52 = vtos %v51
    %v53 = vld [vmem:[#allocation2 + $0x210] sm:$0x3f]
    %v54 = vld [vmem:[#allocation2 + $0x220] sm:$0x3f]
    %v55 = vstv %s52
    %v56 = vmul.f32 %v55, %v53
    %v57 = vadd.f32 %v56, %v54
    %vm58 = vcmask 259072
    %v59 = vsel %vm58, %v57, inf
    %60 = vmin.xlane.f32.xlu0 %v59
    %v61 = vpop.xlane.xlu0 %60
    %v62 = vsel %vm58, %v57, -inf
    %63 = vmax.xlane.f32.xlu0 %v62
    %v64 = vpop.xlane.xlu0 %63
    %v65 = vsub.f32 %v64, %v61
    %vm66 = vcmp.ne.f32.partialorder %v65, 0.0
    %v67 = vsel %vm66, %v65, 1.0
    %v68 = vrcp.pop %v67
    %v69 = vsub.f32 %v57, %v61
    %v70 = vmul.f32 %v69, %v68
    %v72 = vrot.slane %v70, 1
    %73 = vrot.lane.b32.xlu0 %v72, 32
    %v74 = vpop.permute.xlu0 %73
    %v76 = vrot.slane %v70, 2
    %77 = vrot.lane.b32.xlu0 %v76, 64
    %v78 = vpop.permute.xlu0 %77
    %v80 = vrot.slane %v70, 3
    %81 = vrot.lane.b32.xlu0 %v80, 96
    %v82 = vpop.permute.xlu0 %81
    %v84 = vrot.slane %v70, 4
    %v86 = vrot.slane %v70, 5
    %87 = vrot.lane.b32.xlu0 %v86, 32
    %v88 = vpop.permute.xlu0 %87
    %vm90 = vcmask 261120
    %v91 = vsel %vm90, %v70, %v74
    %vm92 = vcmask 523264
    %v93 = vsel %vm92, %v91, %v78
    %vm94 = vcmask 785408
    %v95 = vsel %vm94, %v93, %v82
    %v96 = vsel %vm90, %v84, %v88
    %v97 = vld [vmem:[%s2] sm:$0x3f]
    %vm98 = vcmask 13312
    %v99 = vsel %vm98, %v97, 0.0
    %v100 = vrot.slane %v99, 4
    %v101 = vadd.f32 %v99, %v100
    %v102 = vrot.slane %v101, 2
    %v103 = vadd.f32 %v101, %v102
    %v104 = vrot.slane %v103, 1
    %v105 = vadd.f32 %v103, %v104
    %v106 = vld [vmem:[#allocation2 + $0x1f0] sm:$0x3]
    %v107 = vld [vmem:[#allocation2 + $0x1f8] sm:$0x3]
    %s108 = scalar_lea.vmem [#allocation2], 512
    %v109 = vld [vmem:[%s108] ss:$8 sm:$0x3]
    %111 = vset.pattern.permute.xlu0 0
    %112 = vperm.xlu0 %111, %v105
    %v113 = vpop.permute.xlu0 %112
    %v115 = vmul.f32 %v113, %v106
    %v116 = vmul.f32 %v113, %v107
    %117 = vset.pattern.permute.xlu0 1
    %118 = vperm.xlu0 %117, %v105
    %v119 = vpop.permute.xlu0 %118
    %v121 = vmul.f32 %v119, %v106
    %v122 = vmul.f32 %v119, %v107
    %v125 = vrot.slane %v121, 1
    %v126 = vrot.slane %v122, 1
    %v129 = vadd.f32 %v115, %v125
    %v130 = vadd.f32 %v116, %v126
    %v131 = vmul.f32 %v109, 6.0
    %v133 = vlaneseq
    %v134 = vshrl.u32 %v133, 7
    %v135 = vsub.s32 0, %v134
    %v136 = vrot.slane %v131, %v135
    %v137 = vlaneseq
    %v138 = vshrl.u32 %v137, 7
    %v139 = vsub.s32 1, %v138
    %v140 = vrot.slane %v131, %v139
    %v143 = vadd.f32 %v129, %v136
    %v144 = vadd.f32 %v130, %v140
    %v145 = vld [vmem:[#allocation2] sm:$0xff]
    %v146 = vld [vmem:[#allocation2 + $0x8] sm:$0xff]
    %v147 = vld [vmem:[#allocation2 + $0x10] sm:$0xff]
    %v148 = vld [vmem:[#allocation2 + $0x18] sm:$0xff]
    %v149 = vld [vmem:[#allocation2 + $0x20] sm:$0xff]
    %v150 = vld [vmem:[#allocation2 + $0x28] sm:$0xff]
    %v151 = vld [vmem:[#allocation2 + $0x30] sm:$0xff]
    %v152 = vld [vmem:[#allocation2 + $0x38] sm:$0xff]
    %s153 = scalar_lea.vmem [#allocation2], 448
    %v154 = vld [vmem:[%s153] ss:$8 sm:$0x3]
    %v155 = vld [vmem:[%s0] sm:$0xff]
    %v157 = vlaneseq
    %v158 = vshrl.u32 %v157, 7
    %v159 = vsub.s32 0, %v158
    %v160 = vrot.slane %v154, %v159
    %v161 = vlaneseq
    %v162 = vshrl.u32 %v161, 7
    %v163 = vsub.s32 1, %v162
    %v164 = vrot.slane %v154, %v163
    %v168 = vsel %vm90, %v155, 0
    %170 = vmatprep.subr.mxu0 %v146
    %171 = vmatpush1.msra.mxu0 %v145
    %172 = vmatprep.subr.mxu0 %v148
    %173 = vmatpush1.msra.mxu0 %v147
    %174 = vmatprep.subr.mxu0 %v150
    %175 = vmatpush1.msra.mxu0 %v149
    %176 = vmatprep.subr.mxu0 %v152
    %177 = vmatpush1.msra.mxu0 %v151
    %178 = vmatprep.subr.mxu0 0.0
    %179 = vmatpush1.msra.mxu0 0.0
    %180 = vmatprep.subr.mxu0 0.0
    %181 = vmatpush1.msra.mxu0 0.0
    %182 = vmatprep.subr.mxu0 0.0
    %183 = vmatpush1.msra.mxu0 0.0
    %184 = vmatprep.subr.mxu0 0.0
    %185 = vmatpush1.msra.mxu0 0.0
    %186 = vmatprep.subr.mxu0 0.0
    %187 = vmatpush1.msra.mxu0 0.0
    %188 = vmatprep.subr.mxu0 0.0
    %189 = vmatpush1.msra.mxu0 0.0
    %190 = vmatprep.subr.mxu0 0.0
    %191 = vmatpush1.msra.mxu0 0.0
    %192 = vmatprep.subr.mxu0 0.0
    %193 = vmatpush1.msra.mxu0 0.0
    %194 = vmatprep.subr.mxu0 0.0
    %195 = vmatpush1.msra.mxu0 0.0
    %196 = vmatprep.subr.mxu0 0.0
    %197 = vmatpush1.msra.mxu0 0.0
    %198 = vmatprep.subr.mxu0 0.0
    %199 = vmatpush1.msra.mxu0 0.0
    %200 = vmatprep.subr.mxu0 0.0
    %201 = vmatpush1.msra.mxu0 0.0
    %202 = vmatprep.subr.mxu0 0.0
    %203 = vmatpush1.msra.mxu0 0.0
    %204 = vmatprep.subr.mxu0 0.0
    %205 = vmatpush1.msra.mxu0 0.0
    %206 = vmatprep.subr.mxu0 0.0
    %207 = vmatpush1.msra.mxu0 0.0
    %208 = vmatprep.subr.mxu0 0.0
    %209 = vmatpush1.msra.mxu0 0.0
    %210 = vmatprep.subr.mxu0 0.0
    %211 = vmatpush1.msra.mxu0 0.0
    %212 = vmatprep.subr.mxu0 0.0
    %213 = vmatpush1.msra.mxu0 0.0
    %214 = vmatprep.subr.mxu0 0.0
    %215 = vmatpush1.msra.mxu0 0.0
    %216 = vmatprep.subr.mxu0 0.0
    %217 = vmatpush1.msra.mxu0 0.0
    %218 = vmatprep.subr.mxu0 0.0
    %219 = vmatpush1.msra.mxu0 0.0
    %220 = vmatprep.subr.mxu0 0.0
    %221 = vmatpush1.msra.mxu0 0.0
    %222 = vmatprep.subr.mxu0 0.0
    %223 = vmatpush1.msra.mxu0 0.0
    %224 = vmatprep.subr.mxu0 0.0
    %225 = vmatpush1.msra.mxu0 0.0
    %226 = vmatprep.subr.mxu0 0.0
    %227 = vmatpush1.msra.mxu0 0.0
    %228 = vmatprep.subr.mxu0 0.0
    %229 = vmatpush1.msra.mxu0 0.0
    %230 = vmatprep.subr.mxu0 0.0
    %231 = vmatpush1.msra.mxu0 0.0
    %232 = vmatprep.subr.mxu0 0.0
    %233 = vmatpush1.msra.mxu0 0.0
    %234 = vmatprep.mubr.f32.mxu0 0.0
    %235 = vmatmul.mubr.f32.gmra.mrb[0].mxu0 %v168
    %v236 = vpop.f32.mrb[0].mxu0
    %v237 = vadd.f32 %v160, %v236
    %v238 = vpop.f32.mrb[0].mxu0
    %v239 = vadd.f32 %v164, %v238
    %240 = vdwg.mxu0
    %v241 = vlaneseq
    %v242 = vshrl.u32 %v241, 7
    %v243 = vlaneseq
    %v244 = vshrl.u32 %v243, 7
    %v245 = vsub.s32 0, %v244
    %v246 = vrot.slane %v95, %v245
    %v247 = vlaneseq
    %v248 = vshrl.u32 %v247, 7
    %v249 = vsub.s32 0, %v248
    %v250 = vrot.slane %v96, %v249
    %v251 = vmul.f32 %v246, %v237
    %v252 = vmul.f32 %v250, %v239
    %vm253 = vcmp.eq.s32.totalorder %v242, 0
    %s254 = scalar_select %p32, 1, 0
    %v255 = vstv %s254
    %vm256 = vcmp.eq.s32.totalorder %v255, 1
    %vm257 = vmand %vm253, %vm256
    %v258 = vlaneseq
    %v259 = vshrl.u32 %v258, 7
    %v260 = vsub.s32 0, %v259
    %v261 = vrot.slane %v143, %v260
    %v262 = vlaneseq
    %v263 = vshrl.u32 %v262, 7
    %v264 = vsub.s32 0, %v263
    %v265 = vrot.slane %v144, %v264
    %v266 = vsel %vm257, %v261, 0.0
    %v267 = vsel %vm257, %v265, 0.0
    %v268 = vadd.f32 %v251, %v266
    %v269 = vadd.f32 %v252, %v267
    %v270 = vld [vmem:[#allocation2 + $0x40] sm:$0xff]
    %v271 = vld [vmem:[#allocation2 + $0x50] sm:$0xff]
    %v272 = vld [vmem:[#allocation2 + $0x60] sm:$0xff]
    %v273 = vld [vmem:[#allocation2 + $0x70] sm:$0xff]
    %v274 = vld [vmem:[#allocation2 + $0x80] sm:$0xff]
    %v275 = vld [vmem:[#allocation2 + $0x90] sm:$0xff]
    %v276 = vld [vmem:[#allocation2 + $0xa0] sm:$0xff]
    %v277 = vld [vmem:[#allocation2 + $0xb0] sm:$0xff]
    %v278 = vld [vmem:[#allocation2 + $0xc0] sm:$0xff]
    %v279 = vld [vmem:[#allocation2 + $0xd0] sm:$0xff]
    %v280 = vld [vmem:[#allocation2 + $0xe0] sm:$0xff]
    %v281 = vld [vmem:[#allocation2 + $0xf0] sm:$0xff]
    %v282 = vld [vmem:[#allocation2 + $0x100] sm:$0xff]
    %v283 = vld [vmem:[#allocation2 + $0x110] sm:$0xff]
    %v284 = vld [vmem:[#allocation2 + $0x120] sm:$0xff]
    %v285 = vld [vmem:[#allocation2 + $0x130] sm:$0xff]
    %v286 = vld [vmem:[#allocation2 + $0x140] sm:$0xff]
    %v287 = vld [vmem:[#allocation2 + $0x150] sm:$0xff]
    %v288 = vld [vmem:[#allocation2 + $0x160] sm:$0xff]
    %v289 = vld [vmem:[#allocation2 + $0x170] sm:$0xff]
    %v290 = vld [vmem:[#allocation2 + $0x180] sm:$0xff]
    %v291 = vld [vmem:[#allocation2 + $0x190] sm:$0xff]
    %v292 = vld [vmem:[#allocation2 + $0x1a0] sm:$0xff]
    %v293 = vld [vmem:[#allocation2 + $0x1b0] sm:$0xff]
    %v295 = vsel %vm92, %v269, 0
    %297 = vmatprep.subr.mxu0 0.0
    %298 = vmatpush1.msra.mxu0 %v270
    %299 = vmatprep.subr.mxu0 0.0
    %300 = vmatpush1.msra.mxu0 %v271
    %301 = vmatprep.subr.mxu0 0.0
    %302 = vmatpush1.msra.mxu0 %v272
    %303 = vmatprep.subr.mxu0 0.0
    %304 = vmatpush1.msra.mxu0 %v273
    %305 = vmatprep.subr.mxu0 0.0
    %306 = vmatpush1.msra.mxu0 %v274
    %307 = vmatprep.subr.mxu0 0.0
    %308 = vmatpush1.msra.mxu0 %v275
    %309 = vmatprep.subr.mxu0 0.0
    %310 = vmatpush1.msra.mxu0 %v276
    %311 = vmatprep.subr.mxu0 0.0
    %312 = vmatpush1.msra.mxu0 %v277
    %313 = vmatprep.subr.mxu0 0.0
    %314 = vmatpush1.msra.mxu0 %v278
    %315 = vmatprep.subr.mxu0 0.0
    %316 = vmatpush1.msra.mxu0 %v279
    %317 = vmatprep.subr.mxu0 0.0
    %318 = vmatpush1.msra.mxu0 %v280
    %319 = vmatprep.subr.mxu0 0.0
    %320 = vmatpush1.msra.mxu0 %v281
    %321 = vmatprep.subr.mxu0 0.0
    %322 = vmatpush1.msra.mxu0 %v282
    %323 = vmatprep.subr.mxu0 0.0
    %324 = vmatpush1.msra.mxu0 %v283
    %325 = vmatprep.subr.mxu0 0.0
    %326 = vmatpush1.msra.mxu0 %v284
    %327 = vmatprep.subr.mxu0 0.0
    %328 = vmatpush1.msra.mxu0 %v285
    %329 = vmatprep.subr.mxu0 0.0
    %330 = vmatpush1.msra.mxu0 %v286
    %331 = vmatprep.subr.mxu0 0.0
    %332 = vmatpush1.msra.mxu0 %v287
    %333 = vmatprep.subr.mxu0 0.0
    %334 = vmatpush1.msra.mxu0 %v288
    %335 = vmatprep.subr.mxu0 0.0
    %336 = vmatpush1.msra.mxu0 %v289
    %337 = vmatprep.subr.mxu0 0.0
    %338 = vmatpush1.msra.mxu0 %v290
    %339 = vmatprep.subr.mxu0 0.0
    %340 = vmatpush1.msra.mxu0 %v291
    %341 = vmatprep.subr.mxu0 0.0
    %342 = vmatpush1.msra.mxu0 %v292
    %343 = vmatprep.subr.mxu0 0.0
    %344 = vmatpush1.msra.mxu0 %v293
    %345 = vmatprep.subr.mxu0 0.0
    %346 = vmatpush1.msra.mxu0 0.0
    %347 = vmatprep.subr.mxu0 0.0
    %348 = vmatpush1.msra.mxu0 0.0
    %349 = vmatprep.subr.mxu0 0.0
    %350 = vmatpush1.msra.mxu0 0.0
    %351 = vmatprep.subr.mxu0 0.0
    %352 = vmatpush1.msra.mxu0 0.0
    %353 = vmatprep.subr.mxu0 0.0
    %354 = vmatpush1.msra.mxu0 0.0
    %355 = vmatprep.subr.mxu0 0.0
    %356 = vmatpush1.msra.mxu0 0.0
    %357 = vmatprep.subr.mxu0 0.0
    %358 = vmatpush1.msra.mxu0 0.0
    %359 = vmatprep.subr.mxu0 0.0
    %360 = vmatpush1.msra.mxu0 0.0
    %361 = vmatprep.mubr.f32.mxu0 %v295
    %362 = vmatmul.mubr.f32.gmra.mrb[0].mxu0 %v268
    %v363 = vpop.f32.mrb[0].mxu0
    %v364 = vadd.f32 0.0, %v363
    %v365 = vpop.f32.mrb[0].mxu0
    %366 = vdwg.mxu0
    %v367 = vlaneseq
    %v368 = vand.u32 %v367, 127
    %v369 = vld [vmem:[#allocation2 + $0x1d0] ss:$0 sm:$0xff]
    %v370 = vld [vmem:[#allocation2 + $0x1e0] ss:$0 sm:$0xff]
    %v371 = vadd.f32 %v364, %v369
    %v372 = vtanh.pop %v371
    %v373 = vmul.f32 %v372, 1.6
    %v374 = vxor.u32 %v371, 2147483648
    %v375 = vmul.f32 %v374, 1.442695
    %v376 = vpow.pop %v375
    %v377 = vadd.f32 %v376, 1.0
    %v378 = vrcp.pop %v377
    %v379 = vmul.f32 1.0, %v378
    %vm380 = vcmp.eq.s32.totalorder %v368, 7
    %v382 = vrot.slane %v34, 1
    %383 = vrot.lane.b32.xlu0 %v382, 127
    %v384 = vpop.permute.xlu0 %383
    %s385 = vtos %v384
    %v386 = vstv %s385
    %v388 = vsel %vm380, %v386, 1.0
    %v389 = vmul.f32 %v379, %v388
    %v390 = vmul.f32 %v370, 3.0
    %v391 = vsel %vm257, %v390, 0.0
    %v392 = vadd.f32 %v364, %v391
    %vm393 = vcmp.lt.s32.totalorder %v368, 2
    %vm394 = vcmp.lt.s32.totalorder %v368, 4
    %v395 = vsel %vm394, %v373, %v389
    %v396 = vsel %vm393, %v392, %v395
    %vm397 = vcmp.lt.s32.totalorder %v368, 8
    %v398 = vsel %vm397, %v396, 0.0
    %399 = vst [vmem:[#allocation5] sm:$0xff] %v398
    // Predicated region
    $region22: #{many_to_one_forward.1} parent=1 // pred_check
      _
    $region23: #{many_to_one_forward.1} parent=1 // pred_check_branch
      %401 = sbr.rel (0) target = $region25
    $region24: #{many_to_one_forward.1} parent=1 // pred_region
      %s403 = ssub.s32 128, 128
      %404 = vsyncadd [#allocation4], %s403
      %s406 = sshll.u32 [#allocation5], 4
      %s407 = int_to_ptr.vmem [resolvable:$true] %s406
      %409 = dma.vmem_to_hbm [thread:$0]  %s407, 128, %s4, [#allocation4]
    $region25: #{many_to_one_forward.1} parent=1 // pred_fallthru
      _
    // Predicated region
    $region26: #{many_to_one_forward.1} parent=1 // pred_check
      _
    $region27: #{many_to_one_forward.1} parent=1 // pred_check_branch
      %411 = sbr.rel (0) target = $region29
    $region28: #{many_to_one_forward.1} parent=1 // pred_region
      %412 = dma.done [#allocation4], 128
    $region29: #{many_to_one_forward.1} parent=1 // pred_fallthru
      _
    %413 = vsyncpa [#allocation3], 1
    %414 = vsyncpa [#allocation4], 1

</llo_original>
